<compile_context>
chip_gen: v5e
topology: v5e:2x2
jax: 0.10.0
libtpu: 0.0.40
codegen_flags: <defaults>
</compile_context>

<pallas_src>
import functools

import jax
import jax.numpy as jnp
from jax.experimental import pallas as pl
from jax.experimental.pallas import tpu as pltpu

_EPS = 1e-6          # F.pairwise_distance default eps
_ROW_UNIT = 1024     # row-tile granularity (keeps every BlockSpec (8,128)-aligned)


def _round_up(x, m):
    return ((x + m - 1) // m) * m


def _tensorcores_per_device():
    """Best-effort TensorCore count per device (megacore v4/v5p, dual-TC v7x)."""
    try:
        kind = jax.devices()[0].device_kind.lower()
    except Exception:
        return 1
    if any(tag in kind for tag in ("v4", "v5p", "v7", "7x")):
        return 2
    return 1


def _contrastive_kernel(e1_ref, e2_ref, posw_ref, negw_ref, out_ref, acc_ref, *,
                        margin, total_rows, tile_b):
    c = pl.program_id(0)              # chunk ("parallel") axis
    i = pl.program_id(1)              # reduction ("arbitrary") axis
    inner = pl.num_programs(1)
    rows = tile_b // 128

    @pl.when(i == 0)
    def _():
        acc_ref[...] = jnp.zeros_like(acc_ref)

    # ---- hot path: elementwise diff + lane (D) reduction --------------------
    d = e1_ref[...].astype(jnp.float32) - e2_ref[...].astype(jnp.float32) + _EPS
    sq = jnp.sum(d * d, axis=-1)                       # (tile_b,)  == dist^2

    # ---- lane-dense per-row tail: (rows, 128) instead of (tile_b, 1) --------
    sq = sq.reshape(rows, 128)
    dist = jnp.sqrt(sq)
    hinge = jnp.maximum(margin - dist, 0.0)
    per_row = posw_ref[...] * sq + negw_ref[...] * (hinge * hinge)

    # Rows past the true batch (partial final tile / clamped repeat tiles) are
    # removed with a select so undefined tail data cannot leak NaN/Inf.
    row0 = (c * inner + i) * tile_b
    rid = (row0
           + jax.lax.broadcasted_iota(jnp.int32, (rows, 128), 0) * 128
           + jax.lax.broadcasted_iota(jnp.int32, (rows, 128), 1))
    acc_ref[...] += jnp.where(rid < total_rows, per_row, 0.0)

    @pl.when(i == inner - 1)
    def _():
        col = jnp.sum(acc_ref[...], axis=1, keepdims=True)    # (rows, 1)
        out_ref[...] = jnp.sum(col, axis=0, keepdims=True)    # (1, 1)


def contrastive_loss(emb1, emb2, label, margin=1.0, tile_b=None, num_chunks=None):
    """mean(label * d^2 + (1-label) * clamp(margin - d, 0)^2), d = ||e1-e2+eps||_2."""
    B, D = emb1.shape
    itemsize = jnp.dtype(emb1.dtype).itemsize
    d_lanes = _round_up(D, 128)                 # lane-padded width of a VMEM tile

    # ---- row-tile size -------------------------------------------------------
    # ~24 MiB for the two embedding inputs x two pipeline buffers: big enough to
    # sit on the HBM roofline on v5e/v6e/v7x, small enough (<48 MiB total with
    # headroom) for v7x's 64 MiB physical VMEM.
    auto_rows = max(1, (24 * 1024 * 1024) // (4 * d_lanes * itemsize))
    if tile_b is None:
        tile_b = auto_rows
    unit = _ROW_UNIT if auto_rows >= _ROW_UNIT else 128   # very wide D: smaller unit
    tile_b = max(unit, min(8192, (int(tile_b) // unit) * unit))

    pad_rows = 0
    if B >= unit:
        # Large batch: never copy/pad the embeddings.  The last tile is a partial
        # block; out-of-range rows are masked in-kernel.
        tile_b = min(tile_b, (B // unit) * unit)
    else:
        # Tiny batch: one 128-row-aligned tile; the pad copy is negligible here.
        tile_b = _round_up(max(B, 1), 128)
        pad_rows = tile_b - B
        if pad_rows:
            emb1 = jnp.pad(emb1, ((0, pad_rows), (0, 0)))
            emb2 = jnp.pad(emb2, ((0, pad_rows), (0, 0)))

    n_tiles = pl.cdiv(B + pad_rows, tile_b)

    # ---- chunk ("parallel") axis: one chunk per TensorCore -------------------
    if num_chunks is None:
        num_chunks = 2 if (_tensorcores_per_device() >= 2 and n_tiles >= 2) else 1
    num_chunks = max(1, min(int(num_chunks), n_tiles))
    inner = pl.cdiv(n_tiles, num_chunks)
    last_tile = n_tiles - 1
    # TODO(synk): on v7x, if plain "parallel" does not shard this axis across the
    # two TensorCores, switch it to pltpu.CORE_PARALLEL.

    # ---- labels -> lane-dense weight streams (pos = label, neg = 1 - label) ---
    label_f = jnp.asarray(label, jnp.float32).reshape(B)
    w_len = n_tiles * tile_b
    pos_w = jnp.pad(label_f, (0, w_len - B)).reshape(w_len // 128, 128)
    neg_w = jnp.pad(1.0 - label_f, (0, w_len - B)).reshape(w_len // 128, 128)

    # ---- VMEM budget ----------------------------------------------------------
    vmem_need = (4 * tile_b * d_lanes * itemsize      # embedding double-buffers
                 + 16 * tile_b                        # weight double-buffers (f32)
                 + 4 * tile_b                         # accumulator scratch
                 + (2 << 20))                         # headroom
    vmem_limit = int(min(max(vmem_need * 13 // 10, 32 << 20), 48 << 20))

    def tile_map(c, i):
        # Clamp so an odd tile count with 2 chunks re-reads the last tile instead
        # of requiring padded inputs; the repeated rows are masked in-kernel.
        return (jnp.minimum(c * inner + i, last_tile), 0)

    kernel = functools.partial(_contrastive_kernel, margin=float(margin),
                               total_rows=B, tile_b=tile_b)

    partial_sums = pl.pallas_call(
        kernel,
        out_shape=jax.ShapeDtypeStruct((num_chunks, 1), jnp.float32),
        grid_spec=pltpu.PrefetchScalarGridSpec(
            num_scalar_prefetch=0,
            grid=(num_chunks, inner),
            in_specs=[
                pl.BlockSpec((tile_b, D), tile_map),
                pl.BlockSpec((tile_b, D), tile_map),
                pl.BlockSpec((tile_b // 128, 128), tile_map),
                pl.BlockSpec((tile_b // 128, 128), tile_map),
            ],
            out_specs=pl.BlockSpec((1, 1), lambda c, i: (c, 0)),
            scratch_shapes=[pltpu.VMEM((tile_b // 128, 128), jnp.float32)],
        ),
        compiler_params=pltpu.CompilerParams(
            dimension_semantics=("parallel", "arbitrary"),
            vmem_limit_bytes=vmem_limit,
        ),
    )(emb1, emb2, pos_w, neg_w)

    # TODO(synk): lane-packing of multiple rows per vreg when D << 128 is not done;
    # small-D inputs waste lanes in the elementwise hot path (results stay correct).
    return jnp.sum(partial_sums) / jnp.float32(B)


def _reference(emb1, emb2, label, margin=1.0):
    d = emb1.astype(jnp.float32) - emb2.astype(jnp.float32) + _EPS
    dist = jnp.sqrt(jnp.sum(d * d, axis=-1))
    hinge = jnp.maximum(margin - dist, 0.0)
    return jnp.mean(label * dist**2 + (1.0 - label) * hinge**2)


if __name__ == "__main__":
    def _check(name, e1, e2, lb, **kw):
        got = contrastive_loss(e1, e2, lb, **kw)
        jax.block_until_ready(got)
        ref = _reference(e1, e2, lb, margin=kw.get("margin", 1.0))
        assert jnp.allclose(got, ref, atol=1e-4, rtol=1e-4), (name, got, ref)

    # 1) tiny batch (the module's typical smoke-test shape): single padded tile.
    k1, k2, k3 = jax.random.split(jax.random.PRNGKey(0), 3)
    e1 = jax.random.normal(k1, (8, 32), jnp.float32)
    e2 = jax.random.normal(k2, (8, 32), jnp.float32)
    lb = (jax.random.uniform(k3, (8,)) > 0.5).astype(jnp.float32)
    _check("tiny", e1, e2, lb)

    # 2) ragged batch, forced tile / forced 2-chunk split: exercises the un-padded
    #    partial final block, in-kernel row masking and the clamped repeat tile.
    k4, k5, k6 = jax.random.split(jax.random.PRNGKey(1), 3)
    a1 = jax.random.normal(k4, (2500, 32), jnp.float32)
    a2 = jax.random.normal(k5, (2500, 32), jnp.float32)
    al = (jax.random.uniform(k6, (2500,)) > 0.5).astype(jnp.float32)
    _check("ragged", a1, a2, al, tile_b=1024, num_chunks=2)

    # 3) bf16 embeddings stream as bf16 (auto tile / auto chunking), margin != 1.
    _check("bf16", a1.astype(jnp.bfloat16), a2.astype(jnp.bfloat16), al, margin=0.75)

    print("KERNEL_OK")
</pallas_src>

<mosaic_0001>
module attributes {stable_mosaic.version = 11 : i64} {
  func.func @_contrastive_kernel(%arg0: i32, %arg1: i32, %arg2: memref<128x32xf32, #tpu.memory_space<vmem>>, %arg3: memref<128x32xf32, #tpu.memory_space<vmem>>, %arg4: memref<1x128xf32, #tpu.memory_space<vmem>>, %arg5: memref<1x128xf32, #tpu.memory_space<vmem>>, %arg6: memref<1x1xf32, #tpu.memory_space<vmem>>, %arg7: memref<1x128xf32, #tpu.memory_space<vmem>>) attributes {dimension_semantics = [#tpu.dimension_semantics<parallel>, #tpu.dimension_semantics<arbitrary>], iteration_bounds = array<i64: 1, 1>, scalar_prefetch = 0 : i64, scratch_operands = 1 : i64, tpu.core_type = #tpu.core_type<tc>, window_params = [{transform_indices = @transform_0, window_bounds = array<i64: 128, 32>}, {transform_indices = @transform_1, window_bounds = array<i64: 128, 32>}, {transform_indices = @transform_2, window_bounds = array<i64: 1, 128>}, {transform_indices = @transform_3, window_bounds = array<i64: 1, 128>}, {transform_indices = @transform_4, window_bounds = array<i64: 1, 1>}]} {
    %c0_i32 = arith.constant 0 : i32
    %0 = arith.cmpi eq, %arg1, %c0_i32 : i32
    %1 = arith.extui %0 : i1 to i32
    %c0_i32_0 = arith.constant 0 : i32
    %2 = arith.cmpi ne, %1, %c0_i32_0 : i32
    scf.if %2 {
      %cst_19 = arith.constant 0.000000e+00 : f32
      %42 = vector.broadcast %cst_19 : f32 to vector<1x128xf32>
      %c0_20 = arith.constant 0 : index
      %c0_21 = arith.constant 0 : index
      %43 = vector.load %arg7[%c0_20, %c0_21] : memref<1x128xf32, #tpu.memory_space<vmem>>, vector<1x128xf32>
      tpu.vector_store %arg7[%c0_20, %c0_21], %42 {strides = array<i32>} : memref<1x128xf32, #tpu.memory_space<vmem>>, vector<1x128xf32>,
    } else {
    }
    %c0 = arith.constant 0 : index
    %c0_1 = arith.constant 0 : index
    %3 = vector.load %arg2[%c0, %c0_1] : memref<128x32xf32, #tpu.memory_space<vmem>>, vector<128x32xf32>
    %c0_2 = arith.constant 0 : index
    %c0_3 = arith.constant 0 : index
    %4 = vector.load %arg3[%c0_2, %c0_3] : memref<128x32xf32, #tpu.memory_space<vmem>>, vector<128x32xf32>
    %5 = arith.subf %3, %4 : vector<128x32xf32>
    %cst = arith.constant 9.99999997E-7 : f32
    %6 = vector.broadcast %cst : f32 to vector<128x32xf32>
    %7 = arith.addf %5, %6 : vector<128x32xf32>
    %8 = arith.mulf %7, %7 : vector<128x32xf32>
    %cst_4 = arith.constant dense<0.000000e+00> : vector<128xf32>
    %9 = vector.multi_reduction <add>, %8, %cst_4 [1] : vector<128x32xf32> to vector<128xf32>
    %10 = vector.shape_cast %9 : vector<128xf32> to vector<1x128xf32>
    %11 = math.sqrt %10 : vector<1x128xf32>
    %cst_5 = arith.constant 1.000000e+00 : f32
    %12 = vector.broadcast %cst_5 : f32 to vector<1x128xf32>
    %13 = arith.subf %12, %11 : vector<1x128xf32>
    %cst_6 = arith.constant 0.000000e+00 : f32
    %14 = vector.broadcast %cst_6 : f32 to vector<1x128xf32>
    %15 = arith.maximumf %13, %14 : vector<1x128xf32>
    %c0_7 = arith.constant 0 : index
    %c0_8 = arith.constant 0 : index
    %16 = vector.load %arg4[%c0_7, %c0_8] : memref<1x128xf32, #tpu.memory_space<vmem>>, vector<1x128xf32>
    %17 = arith.mulf %16, %10 : vector<1x128xf32>
    %c0_9 = arith.constant 0 : index
    %c0_10 = arith.constant 0 : index
    %18 = vector.load %arg5[%c0_9, %c0_10] : memref<1x128xf32, #tpu.memory_space<vmem>>, vector<1x128xf32>
    %19 = arith.mulf %15, %15 : vector<1x128xf32>
    %20 = arith.mulf %18, %19 : vector<1x128xf32>
    %21 = arith.addf %17, %20 : vector<1x128xf32>
    %c1_i32 = arith.constant 1 : i32
    %22 = arith.muli %arg0, %c1_i32 : i32
    %23 = arith.addi %22, %arg1 : i32
    %c128_i32 = arith.constant 128 : i32
    %24 = arith.muli %23, %c128_i32 : i32
    %25 = tpu.iota {dimensions = array<i32: 0>} : vector<1x128xi32>
    %c128_i32_11 = arith.constant 128 : i32
    %26 = vector.broadcast %c128_i32_11 : i32 to vector<1x128xi32>
    %27 = arith.muli %25, %26 : vector<1x128xi32>
    %28 = vector.broadcast %24 : i32 to vector<1x128xi32>
    %29 = arith.addi %28, %27 : vector<1x128xi32>
    %30 = tpu.iota {dimensions = array<i32: 1>} : vector<1x128xi32>
    %31 = arith.addi %29, %30 : vector<1x128xi32>
    %c0_12 = arith.constant 0 : index
    %c0_13 = arith.constant 0 : index
    %32 = vector.load %arg7[%c0_12, %c0_13] : memref<1x128xf32, #tpu.memory_space<vmem>>, vector<1x128xf32>
    %c8_i32 = arith.constant 8 : i32
    %33 = vector.broadcast %c8_i32 : i32 to vector<1x128xi32>
    %34 = arith.cmpi slt, %31, %33 : vector<1x128xi32>
    %cst_14 = arith.constant 0.000000e+00 : f32
    %35 = vector.broadcast %cst_14 : f32 to vector<1x128xf32>
    %36 = arith.select %34, %21, %35 : vector<1x128xi1>, vector<1x128xf32>
    %37 = arith.addf %32, %36 : vector<1x128xf32>
    %c0_15 = arith.constant 0 : index
    %c0_16 = arith.constant 0 : index
    %38 = vector.load %arg7[%c0_15, %c0_16] : memref<1x128xf32, #tpu.memory_space<vmem>>, vector<1x128xf32>
    tpu.vector_store %arg7[%c0_15, %c0_16], %37 {strides = array<i32>} : memref<1x128xf32, #tpu.memory_space<vmem>>, vector<1x128xf32>,
    %c0_i32_17 = arith.constant 0 : i32
    %39 = arith.cmpi eq, %arg1, %c0_i32_17 : i32
    %40 = arith.extui %39 : i1 to i32
    %c0_i32_18 = arith.constant 0 : i32
    %41 = arith.cmpi ne, %40, %c0_i32_18 : i32
    scf.if %41 {
      %c0_19 = arith.constant 0 : index
      %c0_20 = arith.constant 0 : index
      %42 = vector.load %arg7[%c0_19, %c0_20] : memref<1x128xf32, #tpu.memory_space<vmem>>, vector<1x128xf32>
      %cst_21 = arith.constant dense<0.000000e+00> : vector<1xf32>
      %43 = vector.multi_reduction <add>, %42, %cst_21 [1] : vector<1x128xf32> to vector<1xf32>
      %44 = vector.shape_cast %43 : vector<1xf32> to vector<1x1xf32>
      %cst_22 = arith.constant dense<0.000000e+00> : vector<1xf32>
      %45 = vector.multi_reduction <add>, %44, %cst_22 [0] : vector<1x1xf32> to vector<1xf32>
      %46 = vector.shape_cast %45 : vector<1xf32> to vector<1x1xf32>
      %c0_23 = arith.constant 0 : index
      %c0_24 = arith.constant 0 : index
      %47 = vector.load %arg6[%c0_23, %c0_24] : memref<1x1xf32, #tpu.memory_space<vmem>>, vector<1x1xf32>
      tpu.vector_store %arg6[%c0_23, %c0_24], %46 {strides = array<i32>} : memref<1x1xf32, #tpu.memory_space<vmem>>, vector<1x1xf32>,
    } else {
    }
    return
  }
  func.func @transform_0(%arg0: i32, %arg1: i32) -> (i32, i32) {
    %c1_i32 = arith.constant 1 : i32
    %0 = arith.muli %arg0, %c1_i32 : i32
    %1 = arith.addi %0, %arg1 : i32
    %c0_i32 = arith.constant 0 : i32
    %2 = arith.minsi %1, %c0_i32 : i32
    %c0_i32_0 = arith.constant 0 : i32
    %c0_i32_1 = arith.constant 0 : i32
    return %2, %c0_i32_0 : i32, i32
  }
  func.func @transform_1(%arg0: i32, %arg1: i32) -> (i32, i32) {
    %c1_i32 = arith.constant 1 : i32
    %0 = arith.muli %arg0, %c1_i32 : i32
    %1 = arith.addi %0, %arg1 : i32
    %c0_i32 = arith.constant 0 : i32
    %2 = arith.minsi %1, %c0_i32 : i32
    %c0_i32_0 = arith.constant 0 : i32
    %c0_i32_1 = arith.constant 0 : i32
    return %2, %c0_i32_0 : i32, i32
  }
  func.func @transform_2(%arg0: i32, %arg1: i32) -> (i32, i32) {
    %c1_i32 = arith.constant 1 : i32
    %0 = arith.muli %arg0, %c1_i32 : i32
    %1 = arith.addi %0, %arg1 : i32
    %c0_i32 = arith.constant 0 : i32
    %2 = arith.minsi %1, %c0_i32 : i32
    %c0_i32_0 = arith.constant 0 : i32
    %c0_i32_1 = arith.constant 0 : i32
    return %2, %c0_i32_0 : i32, i32
  }
  func.func @transform_3(%arg0: i32, %arg1: i32) -> (i32, i32) {
    %c1_i32 = arith.constant 1 : i32
    %0 = arith.muli %arg0, %c1_i32 : i32
    %1 = arith.addi %0, %arg1 : i32
    %c0_i32 = arith.constant 0 : i32
    %2 = arith.minsi %1, %c0_i32 : i32
    %c0_i32_0 = arith.constant 0 : i32
    %c0_i32_1 = arith.constant 0 : i32
    return %2, %c0_i32_0 : i32, i32
  }
  func.func @transform_4(%arg0: i32, %arg1: i32) -> (i32, i32) {
    %c0_i32 = arith.constant 0 : i32
    %c0_i32_0 = arith.constant 0 : i32
    return %arg0, %c0_i32 : i32, i32
  }
}

</mosaic_0001>

<llo_original>
// kernel: tpu_custom_call.1
$region0: #{tpu_custom_call.1}
  #allocation0 [shape = 'u32[]', space=smem, size = 0x4, offset = 0x4, fixed_abs, tag = 'smem constant byte address 0x4 - core index']
  #allocation1 [shape = 'u32[72,128]{1,0:T(1,128)}', space=vmem, size = 0x9000, scoped, tag = 'internal scratch']
  #allocation2 [shape = 'f32[1,128]{1,0:T(1,128)}', space=vmem, size = 0x200, scoped, tag = 'scratch operand']
  %s0 = inlined_call_operand.vmem [shape: f32[128,32], index: 0, kind: input, shape index: {}]
  %s1 = inlined_call_operand.vmem [shape: f32[128,32], index: 1, kind: input, shape index: {}]
  %s2 = inlined_call_operand.vmem [shape: f32[1,128], index: 2, kind: input, shape index: {}]
  %s3 = inlined_call_operand.vmem [shape: f32[1,128], index: 3, kind: input, shape index: {}]
  %s4 = inlined_call_operand.hbm [shape: f32[1,1], index: 4, kind: output, shape index: {}]
  %s5 = sld [smem:[#allocation0]]
  $region34: #{tpu_custom_call.1} parent=0
    _
  %s7 = ssub.s32 1, %s5
  %s8 = scalar_select 0, %s7, %s5
  $region1: #{tpu_custom_call.1} parent=0
    #allocation3 [shape = 'u8[512]{0}', space=vmem, size = 0x400, scoped, tag = 'output window, operand 0, single buffered']
    #allocation4 [shape = 's32[1]{0}', space=sflag, size = 0x4, scoped, tag = 'scoped memory for tpu_custom_call.1']
    %9 = vsyncpa [#allocation4], 0
    // Predicated region
    $region2: #{tpu_custom_call.1} parent=1 // pred_check
      _
    $region3: #{tpu_custom_call.1} parent=1 // pred_check_branch
      %11 = sbr.rel (0) target = $region5
    $region4: #{tpu_custom_call.1} parent=1 // pred_region
      %s12 = sadd.s32 0, 0
      %p13 = scmp.lt.s32.totalorder %s12, 0
      %s14 = scalar_select %p13, %s12, 0
      %s15 = smul.u32 16, %s14
      %p16 = scmp.lt.s32.totalorder %s15, 15
      %s17 = scalar_select %p16, %s15, 15
      %s18 = smul.addr %s17, 8
      %s19 = scalar_lea.vmem %s0, %s18
      %s20 = sadd.s32 0, 0
      %p21 = scmp.lt.s32.totalorder %s20, 0
      %s22 = scalar_select %p21, %s20, 0
      %s23 = smul.u32 16, %s22
    $region5: #{tpu_custom_call.1} parent=1 // pred_fallthru
      _
    // Predicated region
    $region6: #{tpu_custom_call.1} parent=1 // pred_check
      _
    $region7: #{tpu_custom_call.1} parent=1 // pred_check_branch
      %25 = sbr.rel (0) target = $region9
    $region8: #{tpu_custom_call.1} parent=1 // pred_region
      %s26 = sadd.s32 0, 0
      %p27 = scmp.lt.s32.totalorder %s26, 0
      %s28 = scalar_select %p27, %s26, 0
      %s29 = smul.u32 16, %s28
      %p30 = scmp.lt.s32.totalorder %s29, 15
      %s31 = scalar_select %p30, %s29, 15
      %s32 = smul.addr %s31, 8
      %s33 = scalar_lea.vmem %s1, %s32
      %s34 = sadd.s32 0, 0
      %p35 = scmp.lt.s32.totalorder %s34, 0
      %s36 = scalar_select %p35, %s34, 0
      %s37 = smul.u32 16, %s36
    $region9: #{tpu_custom_call.1} parent=1 // pred_fallthru
      _
    // Predicated region
    $region10: #{tpu_custom_call.1} parent=1 // pred_check
      _
    $region11: #{tpu_custom_call.1} parent=1 // pred_check_branch
      %39 = sbr.rel (0) target = $region13
    $region12: #{tpu_custom_call.1} parent=1 // pred_region
      %s40 = sadd.s32 0, 0
      %p41 = scmp.lt.s32.totalorder %s40, 0
      %s42 = scalar_select %p41, %s40, 0
      %p43 = scmp.lt.s32.totalorder %s42, 0
      %s44 = scalar_select %p43, %s42, 0
      %s45 = scalar_lea.vmem %s2, %s44
      %s46 = sadd.s32 0, 0
      %p47 = scmp.lt.s32.totalorder %s46, 0
      %s48 = scalar_select %p47, %s46, 0
    $region13: #{tpu_custom_call.1} parent=1 // pred_fallthru
      _
    // Predicated region
    $region14: #{tpu_custom_call.1} parent=1 // pred_check
      _
    $region15: #{tpu_custom_call.1} parent=1 // pred_check_branch
      %50 = sbr.rel (0) target = $region17
    $region16: #{tpu_custom_call.1} parent=1 // pred_region
      %s51 = sadd.s32 0, 0
      %p52 = scmp.lt.s32.totalorder %s51, 0
      %s53 = scalar_select %p52, %s51, 0
      %p54 = scmp.lt.s32.totalorder %s53, 0
      %s55 = scalar_select %p54, %s53, 0
      %s56 = scalar_lea.vmem %s3, %s55
      %s57 = sadd.s32 0, 0
      %p58 = scmp.lt.s32.totalorder %s57, 0
      %s59 = scalar_select %p58, %s57, 0
    $region17: #{tpu_custom_call.1} parent=1 // pred_fallthru
      _
    %s60 = sadd.s32 0, 0
    %p61 = scmp.lt.s32.totalorder %s60, 0
    %s62 = scalar_select %p61, %s60, 0
    %s63 = smul.u32 16, %s62
    %p64 = scmp.lt.s32.totalorder %s63, 15
    %s65 = scalar_select %p64, %s63, 15
    %s66 = smul.addr %s65, 8
    %s67 = scalar_lea.vmem %s0, %s66
    %s68 = sadd.s32 0, 0
    %p69 = scmp.lt.s32.totalorder %s68, 0
    %s70 = scalar_select %p69, %s68, 0
    %s71 = smul.u32 16, %s70
    %p72 = scmp.lt.s32.totalorder %s71, 15
    %s73 = scalar_select %p72, %s71, 15
    %s74 = smul.addr %s73, 8
    %s75 = scalar_lea.vmem %s1, %s74
    %s76 = sadd.s32 0, 0
    %p77 = scmp.lt.s32.totalorder %s76, 0
    %s78 = scalar_select %p77, %s76, 0
    %p79 = scmp.lt.s32.totalorder %s78, 0
    %s80 = scalar_select %p79, %s78, 0
    %s81 = scalar_lea.vmem %s2, %s80
    %s82 = sadd.s32 0, 0
    %p83 = scmp.lt.s32.totalorder %s82, 0
    %s84 = scalar_select %p83, %s82, 0
    %p85 = scmp.lt.s32.totalorder %s84, 0
    %s86 = scalar_select %p85, %s84, 0
    %s87 = scalar_lea.vmem %s3, %s86
    %s88 = sadd.s32 0, 0
    %p89 = scmp.lt.s32.totalorder %s88, 0
    %s90 = scalar_select %p89, %s88, 0
    %s91 = smul.u32 16, %s90
    %p92 = scmp.lt.s32.totalorder %s91, 15
    %s93 = scalar_select %p92, %s91, 15
    %s94 = smul.addr %s93, 8
    %s95 = scalar_lea.vmem %s0, %s94
    %s96 = sadd.s32 0, 0
    %p97 = scmp.lt.s32.totalorder %s96, 0
    %s98 = scalar_select %p97, %s96, 0
    %s99 = smul.u32 16, %s98
    %s100 = sadd.s32 0, 0
    %p101 = scmp.lt.s32.totalorder %s100, 0
    %s102 = scalar_select %p101, %s100, 0
    %s103 = smul.u32 16, %s102
    %p104 = scmp.lt.s32.totalorder %s103, 15
    %s105 = scalar_select %p104, %s103, 15
    %s106 = smul.addr %s105, 8
    %s107 = scalar_lea.vmem %s1, %s106
    %s108 = sadd.s32 0, 0
    %p109 = scmp.lt.s32.totalorder %s108, 0
    %s110 = scalar_select %p109, %s108, 0
    %s111 = smul.u32 16, %s110
    %s112 = sadd.s32 0, 0
    %p113 = scmp.lt.s32.totalorder %s112, 0
    %s114 = scalar_select %p113, %s112, 0
    %p115 = scmp.lt.s32.totalorder %s114, 0
    %s116 = scalar_select %p115, %s114, 0
    %s117 = scalar_lea.vmem %s2, %s116
    %s118 = sadd.s32 0, 0
    %p119 = scmp.lt.s32.totalorder %s118, 0
    %s120 = scalar_select %p119, %s118, 0
    %s121 = sadd.s32 0, 0
    %p122 = scmp.lt.s32.totalorder %s121, 0
    %s123 = scalar_select %p122, %s121, 0
    %p124 = scmp.lt.s32.totalorder %s123, 0
    %s125 = scalar_select %p124, %s123, 0
    %s126 = scalar_lea.vmem %s3, %s125
    %s127 = sadd.s32 0, 0
    %p128 = scmp.lt.s32.totalorder %s127, 0
    %s129 = scalar_select %p128, %s127, 0
    %p130 = scmp.eq.s32.totalorder 0, 0
    // Predicated region
    $region18: #{tpu_custom_call.1} parent=1 // pred_check
      %p131 = pneg %p130
    $region19: #{tpu_custom_call.1} parent=1 // pred_check_branch
      %133 = sbr.rel (%p131) target = $region21
    $region20: #{tpu_custom_call.1} parent=1 // pred_region
      %134 = vst [vmem:[#allocation2] sm:$0x1] 0.0
    $region21: #{tpu_custom_call.1} parent=1 // pred_fallthru
      _
    %v135 = vld [vmem:[%s95] sm:$0xff]
    %v136 = vld [vmem:[%s95 + $0x8] sm:$0xff]
    %v137 = vld [vmem:[%s95 + $0x10] sm:$0xff]
    %v138 = vld [vmem:[%s95 + $0x18] sm:$0xff]
    %v139 = vld [vmem:[%s95 + $0x20] sm:$0xff]
    %v140 = vld [vmem:[%s95 + $0x28] sm:$0xff]
    %v141 = vld [vmem:[%s95 + $0x30] sm:$0xff]
    %v142 = vld [vmem:[%s95 + $0x38] sm:$0xff]
    %v143 = vld [vmem:[%s95 + $0x40] sm:$0xff]
    %v144 = vld [vmem:[%s95 + $0x48] sm:$0xff]
    %v145 = vld [vmem:[%s95 + $0x50] sm:$0xff]
    %v146 = vld [vmem:[%s95 + $0x58] sm:$0xff]
    %v147 = vld [vmem:[%s95 + $0x60] sm:$0xff]
    %v148 = vld [vmem:[%s95 + $0x68] sm:$0xff]
    %v149 = vld [vmem:[%s95 + $0x70] sm:$0xff]
    %v150 = vld [vmem:[%s95 + $0x78] sm:$0xff]
    %v151 = vld [vmem:[%s107] sm:$0xff]
    %v152 = vld [vmem:[%s107 + $0x8] sm:$0xff]
    %v153 = vld [vmem:[%s107 + $0x10] sm:$0xff]
    %v154 = vld [vmem:[%s107 + $0x18] sm:$0xff]
    %v155 = vld [vmem:[%s107 + $0x20] sm:$0xff]
    %v156 = vld [vmem:[%s107 + $0x28] sm:$0xff]
    %v157 = vld [vmem:[%s107 + $0x30] sm:$0xff]
    %v158 = vld [vmem:[%s107 + $0x38] sm:$0xff]
    %v159 = vld [vmem:[%s107 + $0x40] sm:$0xff]
    %v160 = vld [vmem:[%s107 + $0x48] sm:$0xff]
    %v161 = vld [vmem:[%s107 + $0x50] sm:$0xff]
    %v162 = vld [vmem:[%s107 + $0x58] sm:$0xff]
    %v163 = vld [vmem:[%s107 + $0x60] sm:$0xff]
    %v164 = vld [vmem:[%s107 + $0x68] sm:$0xff]
    %v165 = vld [vmem:[%s107 + $0x70] sm:$0xff]
    %v166 = vld [vmem:[%s107 + $0x78] sm:$0xff]
    %v167 = vsub.f32 %v135, %v151
    %v168 = vsub.f32 %v136, %v152
    %v169 = vsub.f32 %v137, %v153
    %v170 = vsub.f32 %v138, %v154
    %v171 = vsub.f32 %v139, %v155
    %v172 = vsub.f32 %v140, %v156
    %v173 = vsub.f32 %v141, %v157
    %v174 = vsub.f32 %v142, %v158
    %v175 = vsub.f32 %v143, %v159
    %v176 = vsub.f32 %v144, %v160
    %v177 = vsub.f32 %v145, %v161
    %v178 = vsub.f32 %v146, %v162
    %v179 = vsub.f32 %v147, %v163
    %v180 = vsub.f32 %v148, %v164
    %v181 = vsub.f32 %v149, %v165
    %v182 = vsub.f32 %v150, %v166
    %v183 = vadd.f32 %v167, 1e-06
    %v184 = vadd.f32 %v168, 1e-06
    %v185 = vadd.f32 %v169, 1e-06
    %v186 = vadd.f32 %v170, 1e-06
    %v187 = vadd.f32 %v171, 1e-06
    %v188 = vadd.f32 %v172, 1e-06
    %v189 = vadd.f32 %v173, 1e-06
    %v190 = vadd.f32 %v174, 1e-06
    %v191 = vadd.f32 %v175, 1e-06
    %v192 = vadd.f32 %v176, 1e-06
    %v193 = vadd.f32 %v177, 1e-06
    %v194 = vadd.f32 %v178, 1e-06
    %v195 = vadd.f32 %v179, 1e-06
    %v196 = vadd.f32 %v180, 1e-06
    %v197 = vadd.f32 %v181, 1e-06
    %v198 = vadd.f32 %v182, 1e-06
    %v199 = vmul.f32 %v183, %v183
    %v200 = vmul.f32 %v184, %v184
    %v201 = vmul.f32 %v185, %v185
    %v202 = vmul.f32 %v186, %v186
    %v203 = vmul.f32 %v187, %v187
    %v204 = vmul.f32 %v188, %v188
    %v205 = vmul.f32 %v189, %v189
    %v206 = vmul.f32 %v190, %v190
    %v207 = vmul.f32 %v191, %v191
    %v208 = vmul.f32 %v192, %v192
    %v209 = vmul.f32 %v193, %v193
    %v210 = vmul.f32 %v194, %v194
    %v211 = vmul.f32 %v195, %v195
    %v212 = vmul.f32 %v196, %v196
    %v213 = vmul.f32 %v197, %v197
    %v214 = vmul.f32 %v198, %v198
    %vm215 = vcmask 261120
    %v216 = vsel %vm215, %v199, 0.0
    %217 = vadd.xlane.f32.xlu0 %v216
    %v218 = vpop.xlane.xlu0 %217
    %v219 = vsel %vm215, %v200, 0.0
    %220 = vadd.xlane.f32.xlu0 %v219
    %v221 = vpop.xlane.xlu0 %220
    %v222 = vsel %vm215, %v201, 0.0
    %223 = vadd.xlane.f32.xlu0 %v222
    %v224 = vpop.xlane.xlu0 %223
    %v225 = vsel %vm215, %v202, 0.0
    %226 = vadd.xlane.f32.xlu0 %v225
    %v227 = vpop.xlane.xlu0 %226
    %v228 = vsel %vm215, %v203, 0.0
    %229 = vadd.xlane.f32.xlu0 %v228
    %v230 = vpop.xlane.xlu0 %229
    %v231 = vsel %vm215, %v204, 0.0
    %232 = vadd.xlane.f32.xlu0 %v231
    %v233 = vpop.xlane.xlu0 %232
    %v234 = vsel %vm215, %v205, 0.0
    %235 = vadd.xlane.f32.xlu0 %v234
    %v236 = vpop.xlane.xlu0 %235
    %v237 = vsel %vm215, %v206, 0.0
    %238 = vadd.xlane.f32.xlu0 %v237
    %v239 = vpop.xlane.xlu0 %238
    %v240 = vsel %vm215, %v207, 0.0
    %241 = vadd.xlane.f32.xlu0 %v240
    %v242 = vpop.xlane.xlu0 %241
    %v243 = vsel %vm215, %v208, 0.0
    %244 = vadd.xlane.f32.xlu0 %v243
    %v245 = vpop.xlane.xlu0 %244
    %v246 = vsel %vm215, %v209, 0.0
    %247 = vadd.xlane.f32.xlu0 %v246
    %v248 = vpop.xlane.xlu0 %247
    %v249 = vsel %vm215, %v210, 0.0
    %250 = vadd.xlane.f32.xlu0 %v249
    %v251 = vpop.xlane.xlu0 %250
    %v252 = vsel %vm215, %v211, 0.0
    %253 = vadd.xlane.f32.xlu0 %v252
    %v254 = vpop.xlane.xlu0 %253
    %v255 = vsel %vm215, %v212, 0.0
    %256 = vadd.xlane.f32.xlu0 %v255
    %v257 = vpop.xlane.xlu0 %256
    %v258 = vsel %vm215, %v213, 0.0
    %259 = vadd.xlane.f32.xlu0 %v258
    %v260 = vpop.xlane.xlu0 %259
    %v261 = vsel %vm215, %v214, 0.0
    %262 = vadd.xlane.f32.xlu0 %v261
    %v263 = vpop.xlane.xlu0 %262
    %v264 = vrsqrt.pop %v218
    %v265 = vmul.f32 %v264, %v218
    %v266 = vmul.f32 %v265, %v264
    %v267 = vmul.f32 0.5, %v266
    %v268 = vsub.f32 1.5, %v267
    %v269 = vmul.f32 %v264, %v268
    %v270 = vmul.f32 %v218, %v269
    %vm271 = vcmp.eq.f32.partialorder %v218, inf
    %v272 = vsel %vm271, %v218, %v270
    %vm273 = vcmp.eq.f32.partialorder %v218, 0.0
    %v274 = vand.u32 %v218, 2147483648
    %v275 = vsel %vm273, %v274, %v272
    %v276 = vrsqrt.pop %v221
    %v277 = vmul.f32 %v276, %v221
    %v278 = vmul.f32 %v277, %v276
    %v279 = vmul.f32 0.5, %v278
    %v280 = vsub.f32 1.5, %v279
    %v281 = vmul.f32 %v276, %v280
    %v282 = vmul.f32 %v221, %v281
    %vm283 = vcmp.eq.f32.partialorder %v221, inf
    %v284 = vsel %vm283, %v221, %v282
    %vm285 = vcmp.eq.f32.partialorder %v221, 0.0
    %v286 = vand.u32 %v221, 2147483648
    %v287 = vsel %vm285, %v286, %v284
    %v288 = vrsqrt.pop %v224
    %v289 = vmul.f32 %v288, %v224
    %v290 = vmul.f32 %v289, %v288
    %v291 = vmul.f32 0.5, %v290
    %v292 = vsub.f32 1.5, %v291
    %v293 = vmul.f32 %v288, %v292
    %v294 = vmul.f32 %v224, %v293
    %vm295 = vcmp.eq.f32.partialorder %v224, inf
    %v296 = vsel %vm295, %v224, %v294
    %vm297 = vcmp.eq.f32.partialorder %v224, 0.0
    %v298 = vand.u32 %v224, 2147483648
    %v299 = vsel %vm297, %v298, %v296
    %v300 = vrsqrt.pop %v227
    %v301 = vmul.f32 %v300, %v227
    %v302 = vmul.f32 %v301, %v300
    %v303 = vmul.f32 0.5, %v302
    %v304 = vsub.f32 1.5, %v303
    %v305 = vmul.f32 %v300, %v304
    %v306 = vmul.f32 %v227, %v305
    %vm307 = vcmp.eq.f32.partialorder %v227, inf
    %v308 = vsel %vm307, %v227, %v306
    %vm309 = vcmp.eq.f32.partialorder %v227, 0.0
    %v310 = vand.u32 %v227, 2147483648
    %v311 = vsel %vm309, %v310, %v308
    %v312 = vrsqrt.pop %v230
    %v313 = vmul.f32 %v312, %v230
    %v314 = vmul.f32 %v313, %v312
    %v315 = vmul.f32 0.5, %v314
    %v316 = vsub.f32 1.5, %v315
    %v317 = vmul.f32 %v312, %v316
    %v318 = vmul.f32 %v230, %v317
    %vm319 = vcmp.eq.f32.partialorder %v230, inf
    %v320 = vsel %vm319, %v230, %v318
    %vm321 = vcmp.eq.f32.partialorder %v230, 0.0
    %v322 = vand.u32 %v230, 2147483648
    %v323 = vsel %vm321, %v322, %v320
    %v324 = vrsqrt.pop %v233
    %v325 = vmul.f32 %v324, %v233
    %v326 = vmul.f32 %v325, %v324
    %v327 = vmul.f32 0.5, %v326
    %v328 = vsub.f32 1.5, %v327
    %v329 = vmul.f32 %v324, %v328
    %v330 = vmul.f32 %v233, %v329
    %vm331 = vcmp.eq.f32.partialorder %v233, inf
    %v332 = vsel %vm331, %v233, %v330
    %vm333 = vcmp.eq.f32.partialorder %v233, 0.0
    %v334 = vand.u32 %v233, 2147483648
    %v335 = vsel %vm333, %v334, %v332
    %v336 = vrsqrt.pop %v236
    %v337 = vmul.f32 %v336, %v236
    %v338 = vmul.f32 %v337, %v336
    %v339 = vmul.f32 0.5, %v338
    %v340 = vsub.f32 1.5, %v339
    %v341 = vmul.f32 %v336, %v340
    %v342 = vmul.f32 %v236, %v341
    %vm343 = vcmp.eq.f32.partialorder %v236, inf
    %v344 = vsel %vm343, %v236, %v342
    %vm345 = vcmp.eq.f32.partialorder %v236, 0.0
    %v346 = vand.u32 %v236, 2147483648
    %v347 = vsel %vm345, %v346, %v344
    %v348 = vrsqrt.pop %v239
    %v349 = vmul.f32 %v348, %v239
    %v350 = vmul.f32 %v349, %v348
    %v351 = vmul.f32 0.5, %v350
    %v352 = vsub.f32 1.5, %v351
    %v353 = vmul.f32 %v348, %v352
    %v354 = vmul.f32 %v239, %v353
    %vm355 = vcmp.eq.f32.partialorder %v239, inf
    %v356 = vsel %vm355, %v239, %v354
    %vm357 = vcmp.eq.f32.partialorder %v239, 0.0
    %v358 = vand.u32 %v239, 2147483648
    %v359 = vsel %vm357, %v358, %v356
    %v360 = vrsqrt.pop %v242
    %v361 = vmul.f32 %v360, %v242
    %v362 = vmul.f32 %v361, %v360
    %v363 = vmul.f32 0.5, %v362
    %v364 = vsub.f32 1.5, %v363
    %v365 = vmul.f32 %v360, %v364
    %v366 = vmul.f32 %v242, %v365
    %vm367 = vcmp.eq.f32.partialorder %v242, inf
    %v368 = vsel %vm367, %v242, %v366
    %vm369 = vcmp.eq.f32.partialorder %v242, 0.0
    %v370 = vand.u32 %v242, 2147483648
    %v371 = vsel %vm369, %v370, %v368
    %v372 = vrsqrt.pop %v245
    %v373 = vmul.f32 %v372, %v245
    %v374 = vmul.f32 %v373, %v372
    %v375 = vmul.f32 0.5, %v374
    %v376 = vsub.f32 1.5, %v375
    %v377 = vmul.f32 %v372, %v376
    %v378 = vmul.f32 %v245, %v377
    %vm379 = vcmp.eq.f32.partialorder %v245, inf
    %v380 = vsel %vm379, %v245, %v378
    %vm381 = vcmp.eq.f32.partialorder %v245, 0.0
    %v382 = vand.u32 %v245, 2147483648
    %v383 = vsel %vm381, %v382, %v380
    %v384 = vrsqrt.pop %v248
    %v385 = vmul.f32 %v384, %v248
    %v386 = vmul.f32 %v385, %v384
    %v387 = vmul.f32 0.5, %v386
    %v388 = vsub.f32 1.5, %v387
    %v389 = vmul.f32 %v384, %v388
    %v390 = vmul.f32 %v248, %v389
    %vm391 = vcmp.eq.f32.partialorder %v248, inf
    %v392 = vsel %vm391, %v248, %v390
    %vm393 = vcmp.eq.f32.partialorder %v248, 0.0
    %v394 = vand.u32 %v248, 2147483648
    %v395 = vsel %vm393, %v394, %v392
    %v396 = vrsqrt.pop %v251
    %v397 = vmul.f32 %v396, %v251
    %v398 = vmul.f32 %v397, %v396
    %v399 = vmul.f32 0.5, %v398
    %v400 = vsub.f32 1.5, %v399
    %v401 = vmul.f32 %v396, %v400
    %v402 = vmul.f32 %v251, %v401
    %vm403 = vcmp.eq.f32.partialorder %v251, inf
    %v404 = vsel %vm403, %v251, %v402
    %vm405 = vcmp.eq.f32.partialorder %v251, 0.0
    %v406 = vand.u32 %v251, 2147483648
    %v407 = vsel %vm405, %v406, %v404
    %v408 = vrsqrt.pop %v254
    %v409 = vmul.f32 %v408, %v254
    %v410 = vmul.f32 %v409, %v408
    %v411 = vmul.f32 0.5, %v410
    %v412 = vsub.f32 1.5, %v411
    %v413 = vmul.f32 %v408, %v412
    %v414 = vmul.f32 %v254, %v413
    %vm415 = vcmp.eq.f32.partialorder %v254, inf
    %v416 = vsel %vm415, %v254, %v414
    %vm417 = vcmp.eq.f32.partialorder %v254, 0.0
    %v418 = vand.u32 %v254, 2147483648
    %v419 = vsel %vm417, %v418, %v416
    %v420 = vrsqrt.pop %v257
    %v421 = vmul.f32 %v420, %v257
    %v422 = vmul.f32 %v421, %v420
    %v423 = vmul.f32 0.5, %v422
    %v424 = vsub.f32 1.5, %v423
    %v425 = vmul.f32 %v420, %v424
    %v426 = vmul.f32 %v257, %v425
    %vm427 = vcmp.eq.f32.partialorder %v257, inf
    %v428 = vsel %vm427, %v257, %v426
    %vm429 = vcmp.eq.f32.partialorder %v257, 0.0
    %v430 = vand.u32 %v257, 2147483648
    %v431 = vsel %vm429, %v430, %v428
    %v432 = vrsqrt.pop %v260
    %v433 = vmul.f32 %v432, %v260
    %v434 = vmul.f32 %v433, %v432
    %v435 = vmul.f32 0.5, %v434
    %v436 = vsub.f32 1.5, %v435
    %v437 = vmul.f32 %v432, %v436
    %v438 = vmul.f32 %v260, %v437
    %vm439 = vcmp.eq.f32.partialorder %v260, inf
    %v440 = vsel %vm439, %v260, %v438
    %vm441 = vcmp.eq.f32.partialorder %v260, 0.0
    %v442 = vand.u32 %v260, 2147483648
    %v443 = vsel %vm441, %v442, %v440
    %v444 = vrsqrt.pop %v263
    %v445 = vmul.f32 %v444, %v263
    %v446 = vmul.f32 %v445, %v444
    %v447 = vmul.f32 0.5, %v446
    %v448 = vsub.f32 1.5, %v447
    %v449 = vmul.f32 %v444, %v448
    %v450 = vmul.f32 %v263, %v449
    %vm451 = vcmp.eq.f32.partialorder %v263, inf
    %v452 = vsel %vm451, %v263, %v450
    %vm453 = vcmp.eq.f32.partialorder %v263, 0.0
    %v454 = vand.u32 %v263, 2147483648
    %v455 = vsel %vm453, %v454, %v452
    %v456 = vsub.f32 1.0, %v275
    %v457 = vsub.f32 1.0, %v287
    %v458 = vsub.f32 1.0, %v299
    %v459 = vsub.f32 1.0, %v311
    %v460 = vsub.f32 1.0, %v323
    %v461 = vsub.f32 1.0, %v335
    %v462 = vsub.f32 1.0, %v347
    %v463 = vsub.f32 1.0, %v359
    %v464 = vsub.f32 1.0, %v371
    %v465 = vsub.f32 1.0, %v383
    %v466 = vsub.f32 1.0, %v395
    %v467 = vsub.f32 1.0, %v407
    %v468 = vsub.f32 1.0, %v419
    %v469 = vsub.f32 1.0, %v431
    %v470 = vsub.f32 1.0, %v443
    %v471 = vsub.f32 1.0, %v455
    %v472 = vmax.f32 %v456, 0.0
    %v473 = vmax.f32 %v457, 0.0
    %v474 = vmax.f32 %v458, 0.0
    %v475 = vmax.f32 %v459, 0.0
    %v476 = vmax.f32 %v460, 0.0
    %v477 = vmax.f32 %v461, 0.0
    %v478 = vmax.f32 %v462, 0.0
    %v479 = vmax.f32 %v463, 0.0
    %v480 = vmax.f32 %v464, 0.0
    %v481 = vmax.f32 %v465, 0.0
    %v482 = vmax.f32 %v466, 0.0
    %v483 = vmax.f32 %v467, 0.0
    %v484 = vmax.f32 %v468, 0.0
    %v485 = vmax.f32 %v469, 0.0
    %v486 = vmax.f32 %v470, 0.0
    %v487 = vmax.f32 %v471, 0.0
    %v488 = vld [vmem:[%s117] sm:$0x1]
    %v505 = vperm.slane %v218, 0
    %v506 = vperm.slane %v218, 1
    %v507 = vperm.slane %v218, 2
    %v508 = vperm.slane %v218, 3
    %v509 = vperm.slane %v218, 4
    %v510 = vperm.slane %v218, 5
    %v511 = vperm.slane %v218, 6
    %v512 = vperm.slane %v218, 7
    %v513 = vperm.slane %v221, 0
    %v514 = vperm.slane %v221, 1
    %v515 = vperm.slane %v221, 2
    %v516 = vperm.slane %v221, 3
    %v517 = vperm.slane %v221, 4
    %v518 = vperm.slane %v221, 5
    %v519 = vperm.slane %v221, 6
    %v520 = vperm.slane %v221, 7
    %v521 = vperm.slane %v224, 0
    %v522 = vperm.slane %v224, 1
    %v523 = vperm.slane %v224, 2
    %v524 = vperm.slane %v224, 3
    %v525 = vperm.slane %v224, 4
    %v526 = vperm.slane %v224, 5
    %v527 = vperm.slane %v224, 6
    %v528 = vperm.slane %v224, 7
    %v529 = vperm.slane %v227, 0
    %v530 = vperm.slane %v227, 1
    %v531 = vperm.slane %v227, 2
    %v532 = vperm.slane %v227, 3
    %v533 = vperm.slane %v227, 4
    %v534 = vperm.slane %v227, 5
    %v535 = vperm.slane %v227, 6
    %v536 = vperm.slane %v227, 7
    %v537 = vperm.slane %v230, 0
    %v538 = vperm.slane %v230, 1
    %v539 = vperm.slane %v230, 2
    %v540 = vperm.slane %v230, 3
    %v541 = vperm.slane %v230, 4
    %v542 = vperm.slane %v230, 5
    %v543 = vperm.slane %v230, 6
    %v544 = vperm.slane %v230, 7
    %v545 = vperm.slane %v233, 0
    %v546 = vperm.slane %v233, 1
    %v547 = vperm.slane %v233, 2
    %v548 = vperm.slane %v233, 3
    %v549 = vperm.slane %v233, 4
    %v550 = vperm.slane %v233, 5
    %v551 = vperm.slane %v233, 6
    %v552 = vperm.slane %v233, 7
    %v553 = vperm.slane %v236, 0
    %v554 = vperm.slane %v236, 1
    %v555 = vperm.slane %v236, 2
    %v556 = vperm.slane %v236, 3
    %v557 = vperm.slane %v236, 4
    %v558 = vperm.slane %v236, 5
    %v559 = vperm.slane %v236, 6
    %v560 = vperm.slane %v236, 7
    %v561 = vperm.slane %v239, 0
    %v562 = vperm.slane %v239, 1
    %v563 = vperm.slane %v239, 2
    %v564 = vperm.slane %v239, 3
    %v565 = vperm.slane %v239, 4
    %v566 = vperm.slane %v239, 5
    %v567 = vperm.slane %v239, 6
    %v568 = vperm.slane %v239, 7
    %v569 = vperm.slane %v242, 0
    %v570 = vperm.slane %v242, 1
    %v571 = vperm.slane %v242, 2
    %v572 = vperm.slane %v242, 3
    %v573 = vperm.slane %v242, 4
    %v574 = vperm.slane %v242, 5
    %v575 = vperm.slane %v242, 6
    %v576 = vperm.slane %v242, 7
    %v577 = vperm.slane %v245, 0
    %v578 = vperm.slane %v245, 1
    %v579 = vperm.slane %v245, 2
    %v580 = vperm.slane %v245, 3
    %v581 = vperm.slane %v245, 4
    %v582 = vperm.slane %v245, 5
    %v583 = vperm.slane %v245, 6
    %v584 = vperm.slane %v245, 7
    %v585 = vperm.slane %v248, 0
    %v586 = vperm.slane %v248, 1
    %v587 = vperm.slane %v248, 2
    %v588 = vperm.slane %v248, 3
    %v589 = vperm.slane %v248, 4
    %v590 = vperm.slane %v248, 5
    %v591 = vperm.slane %v248, 6
    %v592 = vperm.slane %v248, 7
    %v593 = vperm.slane %v251, 0
    %v594 = vperm.slane %v251, 1
    %v595 = vperm.slane %v251, 2
    %v596 = vperm.slane %v251, 3
    %v597 = vperm.slane %v251, 4
    %v598 = vperm.slane %v251, 5
    %v599 = vperm.slane %v251, 6
    %v600 = vperm.slane %v251, 7
    %v601 = vperm.slane %v254, 0
    %v602 = vperm.slane %v254, 1
    %v603 = vperm.slane %v254, 2
    %v604 = vperm.slane %v254, 3
    %v605 = vperm.slane %v254, 4
    %v606 = vperm.slane %v254, 5
    %v607 = vperm.slane %v254, 6
    %v608 = vperm.slane %v254, 7
    %v609 = vperm.slane %v257, 0
    %v610 = vperm.slane %v257, 1
    %v611 = vperm.slane %v257, 2
    %v612 = vperm.slane %v257, 3
    %v613 = vperm.slane %v257, 4
    %v614 = vperm.slane %v257, 5
    %v615 = vperm.slane %v257, 6
    %v616 = vperm.slane %v257, 7
    %v617 = vperm.slane %v260, 0
    %v618 = vperm.slane %v260, 1
    %v619 = vperm.slane %v260, 2
    %v620 = vperm.slane %v260, 3
    %v621 = vperm.slane %v260, 4
    %v622 = vperm.slane %v260, 5
    %v623 = vperm.slane %v260, 6
    %v624 = vperm.slane %v260, 7
    %v625 = vperm.slane %v263, 0
    %v626 = vperm.slane %v263, 1
    %v627 = vperm.slane %v263, 2
    %v628 = vperm.slane %v263, 3
    %v629 = vperm.slane %v263, 4
    %v630 = vperm.slane %v263, 5
    %v631 = vperm.slane %v263, 6
    %v632 = vperm.slane %v263, 7
    %633 = vst [vmem:[#allocation1] ss:$9 sm:$0xff] %v505
    %s634 = scalar_lea.vmem [#allocation1], 1
    %635 = vst [vmem:[%s634] ss:$9 sm:$0xff] %v506
    %s636 = scalar_lea.vmem [#allocation1], 2
    %637 = vst [vmem:[%s636] ss:$9 sm:$0xff] %v507
    %s638 = scalar_lea.vmem [#allocation1], 3
    %639 = vst [vmem:[%s638] ss:$9 sm:$0xff] %v508
    %s640 = scalar_lea.vmem [#allocation1], 4
    %641 = vst [vmem:[%s640] ss:$9 sm:$0xff] %v509
    %s642 = scalar_lea.vmem [#allocation1], 5
    %643 = vst [vmem:[%s642] ss:$9 sm:$0xff] %v510
    %s644 = scalar_lea.vmem [#allocation1], 6
    %645 = vst [vmem:[%s644] ss:$9 sm:$0xff] %v511
    %s646 = scalar_lea.vmem [#allocation1], 7
    %647 = vst [vmem:[%s646] ss:$9 sm:$0xff] %v512
    %v648 = vld [vmem:[#allocation1] sm:$0xff]
    %649 = vst [vmem:[#allocation1] ss:$9 sm:$0xff] %v513
    %650 = vst [vmem:[%s634] ss:$9 sm:$0xff] %v514
    %651 = vst [vmem:[%s636] ss:$9 sm:$0xff] %v515
    %652 = vst [vmem:[%s638] ss:$9 sm:$0xff] %v516
    %653 = vst [vmem:[%s640] ss:$9 sm:$0xff] %v517
    %654 = vst [vmem:[%s642] ss:$9 sm:$0xff] %v518
    %655 = vst [vmem:[%s644] ss:$9 sm:$0xff] %v519
    %656 = vst [vmem:[%s646] ss:$9 sm:$0xff] %v520
    %v657 = vld [vmem:[#allocation1] sm:$0xff]
    %658 = vst [vmem:[#allocation1] ss:$9 sm:$0xff] %v521
    %659 = vst [vmem:[%s634] ss:$9 sm:$0xff] %v522
    %660 = vst [vmem:[%s636] ss:$9 sm:$0xff] %v523
    %661 = vst [vmem:[%s638] ss:$9 sm:$0xff] %v524
    %662 = vst [vmem:[%s640] ss:$9 sm:$0xff] %v525
    %663 = vst [vmem:[%s642] ss:$9 sm:$0xff] %v526
    %664 = vst [vmem:[%s644] ss:$9 sm:$0xff] %v527
    %665 = vst [vmem:[%s646] ss:$9 sm:$0xff] %v528
    %v666 = vld [vmem:[#allocation1] sm:$0xff]
    %667 = vst [vmem:[#allocation1] ss:$9 sm:$0xff] %v529
    %668 = vst [vmem:[%s634] ss:$9 sm:$0xff] %v530
    %669 = vst [vmem:[%s636] ss:$9 sm:$0xff] %v531
    %670 = vst [vmem:[%s638] ss:$9 sm:$0xff] %v532
    %671 = vst [vmem:[%s640] ss:$9 sm:$0xff] %v533
    %672 = vst [vmem:[%s642] ss:$9 sm:$0xff] %v534
    %673 = vst [vmem:[%s644] ss:$9 sm:$0xff] %v535
    %674 = vst [vmem:[%s646] ss:$9 sm:$0xff] %v536
    %v675 = vld [vmem:[#allocation1] sm:$0xff]
    %676 = vst [vmem:[#allocation1] ss:$9 sm:$0xff] %v537
    %677 = vst [vmem:[%s634] ss:$9 sm:$0xff] %v538
    %678 = vst [vmem:[%s636] ss:$9 sm:$0xff] %v539
    %679 = vst [vmem:[%s638] ss:$9 sm:$0xff] %v540
    %680 = vst [vmem:[%s640] ss:$9 sm:$0xff] %v541
    %681 = vst [vmem:[%s642] ss:$9 sm:$0xff] %v542
    %682 = vst [vmem:[%s644] ss:$9 sm:$0xff] %v543
    %683 = vst [vmem:[%s646] ss:$9 sm:$0xff] %v544
    %v684 = vld [vmem:[#allocation1] sm:$0xff]
    %685 = vst [vmem:[#allocation1] ss:$9 sm:$0xff] %v545
    %686 = vst [vmem:[%s634] ss:$9 sm:$0xff] %v546
    %687 = vst [vmem:[%s636] ss:$9 sm:$0xff] %v547
    %688 = vst [vmem:[%s638] ss:$9 sm:$0xff] %v548
    %689 = vst [vmem:[%s640] ss:$9 sm:$0xff] %v549
    %690 = vst [vmem:[%s642] ss:$9 sm:$0xff] %v550
    %691 = vst [vmem:[%s644] ss:$9 sm:$0xff] %v551
    %692 = vst [vmem:[%s646] ss:$9 sm:$0xff] %v552
    %v693 = vld [vmem:[#allocation1] sm:$0xff]
    %694 = vst [vmem:[#allocation1] ss:$9 sm:$0xff] %v553
    %695 = vst [vmem:[%s634] ss:$9 sm:$0xff] %v554
    %696 = vst [vmem:[%s636] ss:$9 sm:$0xff] %v555
    %697 = vst [vmem:[%s638] ss:$9 sm:$0xff] %v556
    %698 = vst [vmem:[%s640] ss:$9 sm:$0xff] %v557
    %699 = vst [vmem:[%s642] ss:$9 sm:$0xff] %v558
    %700 = vst [vmem:[%s644] ss:$9 sm:$0xff] %v559
    %701 = vst [vmem:[%s646] ss:$9 sm:$0xff] %v560
    %v702 = vld [vmem:[#allocation1] sm:$0xff]
    %703 = vst [vmem:[#allocation1] ss:$9 sm:$0xff] %v561
    %704 = vst [vmem:[%s634] ss:$9 sm:$0xff] %v562
    %705 = vst [vmem:[%s636] ss:$9 sm:$0xff] %v563
    %706 = vst [vmem:[%s638] ss:$9 sm:$0xff] %v564
    %707 = vst [vmem:[%s640] ss:$9 sm:$0xff] %v565
    %708 = vst [vmem:[%s642] ss:$9 sm:$0xff] %v566
    %709 = vst [vmem:[%s644] ss:$9 sm:$0xff] %v567
    %710 = vst [vmem:[%s646] ss:$9 sm:$0xff] %v568
    %v711 = vld [vmem:[#allocation1] sm:$0xff]
    %712 = vst [vmem:[#allocation1] ss:$9 sm:$0xff] %v569
    %713 = vst [vmem:[%s634] ss:$9 sm:$0xff] %v570
    %714 = vst [vmem:[%s636] ss:$9 sm:$0xff] %v571
    %715 = vst [vmem:[%s638] ss:$9 sm:$0xff] %v572
    %716 = vst [vmem:[%s640] ss:$9 sm:$0xff] %v573
    %717 = vst [vmem:[%s642] ss:$9 sm:$0xff] %v574
    %718 = vst [vmem:[%s644] ss:$9 sm:$0xff] %v575
    %719 = vst [vmem:[%s646] ss:$9 sm:$0xff] %v576
    %v720 = vld [vmem:[#allocation1] sm:$0xff]
    %721 = vst [vmem:[#allocation1] ss:$9 sm:$0xff] %v577
    %722 = vst [vmem:[%s634] ss:$9 sm:$0xff] %v578
    %723 = vst [vmem:[%s636] ss:$9 sm:$0xff] %v579
    %724 = vst [vmem:[%s638] ss:$9 sm:$0xff] %v580
    %725 = vst [vmem:[%s640] ss:$9 sm:$0xff] %v581
    %726 = vst [vmem:[%s642] ss:$9 sm:$0xff] %v582
    %727 = vst [vmem:[%s644] ss:$9 sm:$0xff] %v583
    %728 = vst [vmem:[%s646] ss:$9 sm:$0xff] %v584
    %v729 = vld [vmem:[#allocation1] sm:$0xff]
    %730 = vst [vmem:[#allocation1] ss:$9 sm:$0xff] %v585
    %731 = vst [vmem:[%s634] ss:$9 sm:$0xff] %v586
    %732 = vst [vmem:[%s636] ss:$9 sm:$0xff] %v587
    %733 = vst [vmem:[%s638] ss:$9 sm:$0xff] %v588
    %734 = vst [vmem:[%s640] ss:$9 sm:$0xff] %v589
    %735 = vst [vmem:[%s642] ss:$9 sm:$0xff] %v590
    %736 = vst [vmem:[%s644] ss:$9 sm:$0xff] %v591
    %737 = vst [vmem:[%s646] ss:$9 sm:$0xff] %v592
    %v738 = vld [vmem:[#allocation1] sm:$0xff]
    %739 = vst [vmem:[#allocation1] ss:$9 sm:$0xff] %v593
    %740 = vst [vmem:[%s634] ss:$9 sm:$0xff] %v594
    %741 = vst [vmem:[%s636] ss:$9 sm:$0xff] %v595
    %742 = vst [vmem:[%s638] ss:$9 sm:$0xff] %v596
    %743 = vst [vmem:[%s640] ss:$9 sm:$0xff] %v597
    %744 = vst [vmem:[%s642] ss:$9 sm:$0xff] %v598
    %745 = vst [vmem:[%s644] ss:$9 sm:$0xff] %v599
    %746 = vst [vmem:[%s646] ss:$9 sm:$0xff] %v600
    %v747 = vld [vmem:[#allocation1] sm:$0xff]
    %748 = vst [vmem:[#allocation1] ss:$9 sm:$0xff] %v601
    %749 = vst [vmem:[%s634] ss:$9 sm:$0xff] %v602
    %750 = vst [vmem:[%s636] ss:$9 sm:$0xff] %v603
    %751 = vst [vmem:[%s638] ss:$9 sm:$0xff] %v604
    %752 = vst [vmem:[%s640] ss:$9 sm:$0xff] %v605
    %753 = vst [vmem:[%s642] ss:$9 sm:$0xff] %v606
    %754 = vst [vmem:[%s644] ss:$9 sm:$0xff] %v607
    %755 = vst [vmem:[%s646] ss:$9 sm:$0xff] %v608
    %v756 = vld [vmem:[#allocation1] sm:$0xff]
    %757 = vst [vmem:[#allocation1] ss:$9 sm:$0xff] %v609
    %758 = vst [vmem:[%s634] ss:$9 sm:$0xff] %v610
    %759 = vst [vmem:[%s636] ss:$9 sm:$0xff] %v611
    %760 = vst [vmem:[%s638] ss:$9 sm:$0xff] %v612
    %761 = vst [vmem:[%s640] ss:$9 sm:$0xff] %v613
    %762 = vst [vmem:[%s642] ss:$9 sm:$0xff] %v614
    %763 = vst [vmem:[%s644] ss:$9 sm:$0xff] %v615
    %764 = vst [vmem:[%s646] ss:$9 sm:$0xff] %v616
    %v765 = vld [vmem:[#allocation1] sm:$0xff]
    %766 = vst [vmem:[#allocation1] ss:$9 sm:$0xff] %v617
    %767 = vst [vmem:[%s634] ss:$9 sm:$0xff] %v618
    %768 = vst [vmem:[%s636] ss:$9 sm:$0xff] %v619
    %769 = vst [vmem:[%s638] ss:$9 sm:$0xff] %v620
    %770 = vst [vmem:[%s640] ss:$9 sm:$0xff] %v621
    %771 = vst [vmem:[%s642] ss:$9 sm:$0xff] %v622
    %772 = vst [vmem:[%s644] ss:$9 sm:$0xff] %v623
    %773 = vst [vmem:[%s646] ss:$9 sm:$0xff] %v624
    %v774 = vld [vmem:[#allocation1] sm:$0xff]
    %775 = vst [vmem:[#allocation1] ss:$9 sm:$0xff] %v625
    %776 = vst [vmem:[%s634] ss:$9 sm:$0xff] %v626
    %777 = vst [vmem:[%s636] ss:$9 sm:$0xff] %v627
    %778 = vst [vmem:[%s638] ss:$9 sm:$0xff] %v628
    %779 = vst [vmem:[%s640] ss:$9 sm:$0xff] %v629
    %780 = vst [vmem:[%s642] ss:$9 sm:$0xff] %v630
    %781 = vst [vmem:[%s644] ss:$9 sm:$0xff] %v631
    %782 = vst [vmem:[%s646] ss:$9 sm:$0xff] %v632
    %v783 = vld [vmem:[#allocation1] sm:$0xff]
    %784 = vset.pattern.permute.xlu0 0
    %785 = vperm.xlu0 %784, %v648
    %v786 = vpop.permute.xlu0 %785
    %787 = vset.pattern.permute.xlu0 0
    %788 = vperm.xlu0 %787, %v657
    %v789 = vpop.permute.xlu0 %788
    %790 = vset.pattern.permute.xlu0 0
    %791 = vperm.xlu0 %790, %v666
    %v792 = vpop.permute.xlu0 %791
    %793 = vset.pattern.permute.xlu0 0
    %794 = vperm.xlu0 %793, %v675
    %v795 = vpop.permute.xlu0 %794
    %796 = vset.pattern.permute.xlu0 0
    %797 = vperm.xlu0 %796, %v684
    %v798 = vpop.permute.xlu0 %797
    %799 = vset.pattern.permute.xlu0 0
    %800 = vperm.xlu0 %799, %v693
    %v801 = vpop.permute.xlu0 %800
    %802 = vset.pattern.permute.xlu0 0
    %803 = vperm.xlu0 %802, %v702
    %v804 = vpop.permute.xlu0 %803
    %805 = vset.pattern.permute.xlu0 0
    %806 = vperm.xlu0 %805, %v711
    %v807 = vpop.permute.xlu0 %806
    %808 = vset.pattern.permute.xlu0 0
    %809 = vperm.xlu0 %808, %v720
    %v810 = vpop.permute.xlu0 %809
    %811 = vset.pattern.permute.xlu0 0
    %812 = vperm.xlu0 %811, %v729
    %v813 = vpop.permute.xlu0 %812
    %814 = vset.pattern.permute.xlu0 0
    %815 = vperm.xlu0 %814, %v738
    %v816 = vpop.permute.xlu0 %815
    %817 = vset.pattern.permute.xlu0 0
    %818 = vperm.xlu0 %817, %v747
    %v819 = vpop.permute.xlu0 %818
    %820 = vset.pattern.permute.xlu0 0
    %821 = vperm.xlu0 %820, %v756
    %v822 = vpop.permute.xlu0 %821
    %823 = vset.pattern.permute.xlu0 0
    %824 = vperm.xlu0 %823, %v765
    %v825 = vpop.permute.xlu0 %824
    %826 = vset.pattern.permute.xlu0 0
    %827 = vperm.xlu0 %826, %v774
    %v828 = vpop.permute.xlu0 %827
    %829 = vset.pattern.permute.xlu0 0
    %830 = vperm.xlu0 %829, %v783
    %v831 = vpop.permute.xlu0 %830
    %v832 = vlaneseq
    %v833 = vand.u32 %v832, 127
    %v834 = vperm.slane %v786, %v833
    %v835 = vadd.s32 %v833, 4294967288
    %v836 = vperm.slane %v789, %v835
    %vm837 = vcmask 130112
    %v838 = vsel %vm837, %v836, %v834
    %v839 = vadd.s32 %v833, 4294967280
    %v840 = vperm.slane %v792, %v839
    %vm841 = vcmask 195712
    %v842 = vsel %vm841, %v840, %v838
    %v843 = vadd.s32 %v833, 4294967272
    %v844 = vperm.slane %v795, %v843
    %vm845 = vcmask 261312
    %v846 = vsel %vm845, %v844, %v842
    %v847 = vadd.s32 %v833, 4294967264
    %v848 = vperm.slane %v798, %v847
    %vm849 = vcmask 326912
    %v850 = vsel %vm849, %v848, %v846
    %v851 = vadd.s32 %v833, 4294967256
    %v852 = vperm.slane %v801, %v851
    %vm853 = vcmask 392512
    %v854 = vsel %vm853, %v852, %v850
    %v855 = vadd.s32 %v833, 4294967248
    %v856 = vperm.slane %v804, %v855
    %vm857 = vcmask 458112
    %v858 = vsel %vm857, %v856, %v854
    %v859 = vadd.s32 %v833, 4294967240
    %v860 = vperm.slane %v807, %v859
    %vm861 = vcmask 523712
    %v862 = vsel %vm861, %v860, %v858
    %v863 = vadd.s32 %v833, 4294967232
    %v864 = vperm.slane %v810, %v863
    %vm865 = vcmask 589312
    %v866 = vsel %vm865, %v864, %v862
    %v867 = vadd.s32 %v833, 4294967224
    %v868 = vperm.slane %v813, %v867
    %vm869 = vcmask 654912
    %v870 = vsel %vm869, %v868, %v866
    %v871 = vadd.s32 %v833, 4294967216
    %v872 = vperm.slane %v816, %v871
    %vm873 = vcmask 720512
    %v874 = vsel %vm873, %v872, %v870
    %v875 = vadd.s32 %v833, 4294967208
    %v876 = vperm.slane %v819, %v875
    %vm877 = vcmask 786112
    %v878 = vsel %vm877, %v876, %v874
    %v879 = vadd.s32 %v833, 4294967200
    %v880 = vperm.slane %v822, %v879
    %vm881 = vcmask 851712
    %v882 = vsel %vm881, %v880, %v878
    %v883 = vadd.s32 %v833, 4294967192
    %v884 = vperm.slane %v825, %v883
    %vm885 = vcmask 917312
    %v886 = vsel %vm885, %v884, %v882
    %v887 = vadd.s32 %v833, 4294967184
    %v888 = vperm.slane %v828, %v887
    %vm889 = vcmask 982912
    %v890 = vsel %vm889, %v888, %v886
    %v891 = vadd.s32 %v833, 4294967176
    %v892 = vperm.slane %v831, %v891
    %vm893 = vcmask 1048512
    %v894 = vsel %vm893, %v892, %v890
    %v896 = vmul.f32 %v488, %v894
    %v897 = vld [vmem:[%s126] sm:$0x1]
    %v898 = vmul.f32 %v472, %v472
    %v899 = vmul.f32 %v473, %v473
    %v900 = vmul.f32 %v474, %v474
    %v901 = vmul.f32 %v475, %v475
    %v902 = vmul.f32 %v476, %v476
    %v903 = vmul.f32 %v477, %v477
    %v904 = vmul.f32 %v478, %v478
    %v905 = vmul.f32 %v479, %v479
    %v906 = vmul.f32 %v480, %v480
    %v907 = vmul.f32 %v481, %v481
    %v908 = vmul.f32 %v482, %v482
    %v909 = vmul.f32 %v483, %v483
    %v910 = vmul.f32 %v484, %v484
    %v911 = vmul.f32 %v485, %v485
    %v912 = vmul.f32 %v486, %v486
    %v913 = vmul.f32 %v487, %v487
    %v930 = vperm.slane %v898, 0
    %v931 = vperm.slane %v898, 1
    %v932 = vperm.slane %v898, 2
    %v933 = vperm.slane %v898, 3
    %v934 = vperm.slane %v898, 4
    %v935 = vperm.slane %v898, 5
    %v936 = vperm.slane %v898, 6
    %v937 = vperm.slane %v898, 7
    %v938 = vperm.slane %v899, 0
    %v939 = vperm.slane %v899, 1
    %v940 = vperm.slane %v899, 2
    %v941 = vperm.slane %v899, 3
    %v942 = vperm.slane %v899, 4
    %v943 = vperm.slane %v899, 5
    %v944 = vperm.slane %v899, 6
    %v945 = vperm.slane %v899, 7
    %v946 = vperm.slane %v900, 0
    %v947 = vperm.slane %v900, 1
    %v948 = vperm.slane %v900, 2
    %v949 = vperm.slane %v900, 3
    %v950 = vperm.slane %v900, 4
    %v951 = vperm.slane %v900, 5
    %v952 = vperm.slane %v900, 6
    %v953 = vperm.slane %v900, 7
    %v954 = vperm.slane %v901, 0
    %v955 = vperm.slane %v901, 1
    %v956 = vperm.slane %v901, 2
    %v957 = vperm.slane %v901, 3
    %v958 = vperm.slane %v901, 4
    %v959 = vperm.slane %v901, 5
    %v960 = vperm.slane %v901, 6
    %v961 = vperm.slane %v901, 7
    %v962 = vperm.slane %v902, 0
    %v963 = vperm.slane %v902, 1
    %v964 = vperm.slane %v902, 2
    %v965 = vperm.slane %v902, 3
    %v966 = vperm.slane %v902, 4
    %v967 = vperm.slane %v902, 5
    %v968 = vperm.slane %v902, 6
    %v969 = vperm.slane %v902, 7
    %v970 = vperm.slane %v903, 0
    %v971 = vperm.slane %v903, 1
    %v972 = vperm.slane %v903, 2
    %v973 = vperm.slane %v903, 3
    %v974 = vperm.slane %v903, 4
    %v975 = vperm.slane %v903, 5
    %v976 = vperm.slane %v903, 6
    %v977 = vperm.slane %v903, 7
    %v978 = vperm.slane %v904, 0
    %v979 = vperm.slane %v904, 1
    %v980 = vperm.slane %v904, 2
    %v981 = vperm.slane %v904, 3
    %v982 = vperm.slane %v904, 4
    %v983 = vperm.slane %v904, 5
    %v984 = vperm.slane %v904, 6
    %v985 = vperm.slane %v904, 7
    %v986 = vperm.slane %v905, 0
    %v987 = vperm.slane %v905, 1
    %v988 = vperm.slane %v905, 2
    %v989 = vperm.slane %v905, 3
    %v990 = vperm.slane %v905, 4
    %v991 = vperm.slane %v905, 5
    %v992 = vperm.slane %v905, 6
    %v993 = vperm.slane %v905, 7
    %v994 = vperm.slane %v906, 0
    %v995 = vperm.slane %v906, 1
    %v996 = vperm.slane %v906, 2
    %v997 = vperm.slane %v906, 3
    %v998 = vperm.slane %v906, 4
    %v999 = vperm.slane %v906, 5
    %v1000 = vperm.slane %v906, 6
    %v1001 = vperm.slane %v906, 7
    %v1002 = vperm.slane %v907, 0
    %v1003 = vperm.slane %v907, 1
    %v1004 = vperm.slane %v907, 2
    %v1005 = vperm.slane %v907, 3
    %v1006 = vperm.slane %v907, 4
    %v1007 = vperm.slane %v907, 5
    %v1008 = vperm.slane %v907, 6
    %v1009 = vperm.slane %v907, 7
    %v1010 = vperm.slane %v908, 0
    %v1011 = vperm.slane %v908, 1
    %v1012 = vperm.slane %v908, 2
    %v1013 = vperm.slane %v908, 3
    %v1014 = vperm.slane %v908, 4
    %v1015 = vperm.slane %v908, 5
    %v1016 = vperm.slane %v908, 6
    %v1017 = vperm.slane %v908, 7
    %v1018 = vperm.slane %v909, 0
    %v1019 = vperm.slane %v909, 1
    %v1020 = vperm.slane %v909, 2
    %v1021 = vperm.slane %v909, 3
    %v1022 = vperm.slane %v909, 4
    %v1023 = vperm.slane %v909, 5
    %v1024 = vperm.slane %v909, 6
    %v1025 = vperm.slane %v909, 7
    %v1026 = vperm.slane %v910, 0
    %v1027 = vperm.slane %v910, 1
    %v1028 = vperm.slane %v910, 2
    %v1029 = vperm.slane %v910, 3
    %v1030 = vperm.slane %v910, 4
    %v1031 = vperm.slane %v910, 5
    %v1032 = vperm.slane %v910, 6
    %v1033 = vperm.slane %v910, 7
    %v1034 = vperm.slane %v911, 0
    %v1035 = vperm.slane %v911, 1
    %v1036 = vperm.slane %v911, 2
    %v1037 = vperm.slane %v911, 3
    %v1038 = vperm.slane %v911, 4
    %v1039 = vperm.slane %v911, 5
    %v1040 = vperm.slane %v911, 6
    %v1041 = vperm.slane %v911, 7
    %v1042 = vperm.slane %v912, 0
    %v1043 = vperm.slane %v912, 1
    %v1044 = vperm.slane %v912, 2
    %v1045 = vperm.slane %v912, 3
    %v1046 = vperm.slane %v912, 4
    %v1047 = vperm.slane %v912, 5
    %v1048 = vperm.slane %v912, 6
    %v1049 = vperm.slane %v912, 7
    %v1050 = vperm.slane %v913, 0
    %v1051 = vperm.slane %v913, 1
    %v1052 = vperm.slane %v913, 2
    %v1053 = vperm.slane %v913, 3
    %v1054 = vperm.slane %v913, 4
    %v1055 = vperm.slane %v913, 5
    %v1056 = vperm.slane %v913, 6
    %v1057 = vperm.slane %v913, 7
    %1058 = vst [vmem:[#allocation1] ss:$9 sm:$0xff] %v930
    %s1059 = scalar_lea.vmem [#allocation1], 1
    %1060 = vst [vmem:[%s1059] ss:$9 sm:$0xff] %v931
    %s1061 = scalar_lea.vmem [#allocation1], 2
    %1062 = vst [vmem:[%s1061] ss:$9 sm:$0xff] %v932
    %s1063 = scalar_lea.vmem [#allocation1], 3
    %1064 = vst [vmem:[%s1063] ss:$9 sm:$0xff] %v933
    %s1065 = scalar_lea.vmem [#allocation1], 4
    %1066 = vst [vmem:[%s1065] ss:$9 sm:$0xff] %v934
    %s1067 = scalar_lea.vmem [#allocation1], 5
    %1068 = vst [vmem:[%s1067] ss:$9 sm:$0xff] %v935
    %s1069 = scalar_lea.vmem [#allocation1], 6
    %1070 = vst [vmem:[%s1069] ss:$9 sm:$0xff] %v936
    %s1071 = scalar_lea.vmem [#allocation1], 7
    %1072 = vst [vmem:[%s1071] ss:$9 sm:$0xff] %v937
    %v1073 = vld [vmem:[#allocation1] sm:$0xff]
    %1074 = vst [vmem:[#allocation1] ss:$9 sm:$0xff] %v938
    %1075 = vst [vmem:[%s1059] ss:$9 sm:$0xff] %v939
    %1076 = vst [vmem:[%s1061] ss:$9 sm:$0xff] %v940
    %1077 = vst [vmem:[%s1063] ss:$9 sm:$0xff] %v941
    %1078 = vst [vmem:[%s1065] ss:$9 sm:$0xff] %v942
    %1079 = vst [vmem:[%s1067] ss:$9 sm:$0xff] %v943
    %1080 = vst [vmem:[%s1069] ss:$9 sm:$0xff] %v944
    %1081 = vst [vmem:[%s1071] ss:$9 sm:$0xff] %v945
    %v1082 = vld [vmem:[#allocation1] sm:$0xff]
    %1083 = vst [vmem:[#allocation1] ss:$9 sm:$0xff] %v946
    %1084 = vst [vmem:[%s1059] ss:$9 sm:$0xff] %v947
    %1085 = vst [vmem:[%s1061] ss:$9 sm:$0xff] %v948
    %1086 = vst [vmem:[%s1063] ss:$9 sm:$0xff] %v949
    %1087 = vst [vmem:[%s1065] ss:$9 sm:$0xff] %v950
    %1088 = vst [vmem:[%s1067] ss:$9 sm:$0xff] %v951
    %1089 = vst [vmem:[%s1069] ss:$9 sm:$0xff] %v952
    %1090 = vst [vmem:[%s1071] ss:$9 sm:$0xff] %v953
    %v1091 = vld [vmem:[#allocation1] sm:$0xff]
    %1092 = vst [vmem:[#allocation1] ss:$9 sm:$0xff] %v954
    %1093 = vst [vmem:[%s1059] ss:$9 sm:$0xff] %v955
    %1094 = vst [vmem:[%s1061] ss:$9 sm:$0xff] %v956
    %1095 = vst [vmem:[%s1063] ss:$9 sm:$0xff] %v957
    %1096 = vst [vmem:[%s1065] ss:$9 sm:$0xff] %v958
    %1097 = vst [vmem:[%s1067] ss:$9 sm:$0xff] %v959
    %1098 = vst [vmem:[%s1069] ss:$9 sm:$0xff] %v960
    %1099 = vst [vmem:[%s1071] ss:$9 sm:$0xff] %v961
    %v1100 = vld [vmem:[#allocation1] sm:$0xff]
    %1101 = vst [vmem:[#allocation1] ss:$9 sm:$0xff] %v962
    %1102 = vst [vmem:[%s1059] ss:$9 sm:$0xff] %v963
    %1103 = vst [vmem:[%s1061] ss:$9 sm:$0xff] %v964
    %1104 = vst [vmem:[%s1063] ss:$9 sm:$0xff] %v965
    %1105 = vst [vmem:[%s1065] ss:$9 sm:$0xff] %v966
    %1106 = vst [vmem:[%s1067] ss:$9 sm:$0xff] %v967
    %1107 = vst [vmem:[%s1069] ss:$9 sm:$0xff] %v968
    %1108 = vst [vmem:[%s1071] ss:$9 sm:$0xff] %v969
    %v1109 = vld [vmem:[#allocation1] sm:$0xff]
    %1110 = vst [vmem:[#allocation1] ss:$9 sm:$0xff] %v970
    %1111 = vst [vmem:[%s1059] ss:$9 sm:$0xff] %v971
    %1112 = vst [vmem:[%s1061] ss:$9 sm:$0xff] %v972
    %1113 = vst [vmem:[%s1063] ss:$9 sm:$0xff] %v973
    %1114 = vst [vmem:[%s1065] ss:$9 sm:$0xff] %v974
    %1115 = vst [vmem:[%s1067] ss:$9 sm:$0xff] %v975
    %1116 = vst [vmem:[%s1069] ss:$9 sm:$0xff] %v976
    %1117 = vst [vmem:[%s1071] ss:$9 sm:$0xff] %v977
    %v1118 = vld [vmem:[#allocation1] sm:$0xff]
    %1119 = vst [vmem:[#allocation1] ss:$9 sm:$0xff] %v978
    %1120 = vst [vmem:[%s1059] ss:$9 sm:$0xff] %v979
    %1121 = vst [vmem:[%s1061] ss:$9 sm:$0xff] %v980
    %1122 = vst [vmem:[%s1063] ss:$9 sm:$0xff] %v981
    %1123 = vst [vmem:[%s1065] ss:$9 sm:$0xff] %v982
    %1124 = vst [vmem:[%s1067] ss:$9 sm:$0xff] %v983
    %1125 = vst [vmem:[%s1069] ss:$9 sm:$0xff] %v984
    %1126 = vst [vmem:[%s1071] ss:$9 sm:$0xff] %v985
    %v1127 = vld [vmem:[#allocation1] sm:$0xff]
    %1128 = vst [vmem:[#allocation1] ss:$9 sm:$0xff] %v986
    %1129 = vst [vmem:[%s1059] ss:$9 sm:$0xff] %v987
    %1130 = vst [vmem:[%s1061] ss:$9 sm:$0xff] %v988
    %1131 = vst [vmem:[%s1063] ss:$9 sm:$0xff] %v989
    %1132 = vst [vmem:[%s1065] ss:$9 sm:$0xff] %v990
    %1133 = vst [vmem:[%s1067] ss:$9 sm:$0xff] %v991
    %1134 = vst [vmem:[%s1069] ss:$9 sm:$0xff] %v992
    %1135 = vst [vmem:[%s1071] ss:$9 sm:$0xff] %v993
    %v1136 = vld [vmem:[#allocation1] sm:$0xff]
    %1137 = vst [vmem:[#allocation1] ss:$9 sm:$0xff] %v994
    %1138 = vst [vmem:[%s1059] ss:$9 sm:$0xff] %v995
    %1139 = vst [vmem:[%s1061] ss:$9 sm:$0xff] %v996
    %1140 = vst [vmem:[%s1063] ss:$9 sm:$0xff] %v997
    %1141 = vst [vmem:[%s1065] ss:$9 sm:$0xff] %v998
    %1142 = vst [vmem:[%s1067] ss:$9 sm:$0xff] %v999
    %1143 = vst [vmem:[%s1069] ss:$9 sm:$0xff] %v1000
    %1144 = vst [vmem:[%s1071] ss:$9 sm:$0xff] %v1001
    %v1145 = vld [vmem:[#allocation1] sm:$0xff]
    %1146 = vst [vmem:[#allocation1] ss:$9 sm:$0xff] %v1002
    %1147 = vst [vmem:[%s1059] ss:$9 sm:$0xff] %v1003
    %1148 = vst [vmem:[%s1061] ss:$9 sm:$0xff] %v1004
    %1149 = vst [vmem:[%s1063] ss:$9 sm:$0xff] %v1005
    %1150 = vst [vmem:[%s1065] ss:$9 sm:$0xff] %v1006
    %1151 = vst [vmem:[%s1067] ss:$9 sm:$0xff] %v1007
    %1152 = vst [vmem:[%s1069] ss:$9 sm:$0xff] %v1008
    %1153 = vst [vmem:[%s1071] ss:$9 sm:$0xff] %v1009
    %v1154 = vld [vmem:[#allocation1] sm:$0xff]
    %1155 = vst [vmem:[#allocation1] ss:$9 sm:$0xff] %v1010
    %1156 = vst [vmem:[%s1059] ss:$9 sm:$0xff] %v1011
    %1157 = vst [vmem:[%s1061] ss:$9 sm:$0xff] %v1012
    %1158 = vst [vmem:[%s1063] ss:$9 sm:$0xff] %v1013
    %1159 = vst [vmem:[%s1065] ss:$9 sm:$0xff] %v1014
    %1160 = vst [vmem:[%s1067] ss:$9 sm:$0xff] %v1015
    %1161 = vst [vmem:[%s1069] ss:$9 sm:$0xff] %v1016
    %1162 = vst [vmem:[%s1071] ss:$9 sm:$0xff] %v1017
    %v1163 = vld [vmem:[#allocation1] sm:$0xff]
    %1164 = vst [vmem:[#allocation1] ss:$9 sm:$0xff] %v1018
    %1165 = vst [vmem:[%s1059] ss:$9 sm:$0xff] %v1019
    %1166 = vst [vmem:[%s1061] ss:$9 sm:$0xff] %v1020
    %1167 = vst [vmem:[%s1063] ss:$9 sm:$0xff] %v1021
    %1168 = vst [vmem:[%s1065] ss:$9 sm:$0xff] %v1022
    %1169 = vst [vmem:[%s1067] ss:$9 sm:$0xff] %v1023
    %1170 = vst [vmem:[%s1069] ss:$9 sm:$0xff] %v1024
    %1171 = vst [vmem:[%s1071] ss:$9 sm:$0xff] %v1025
    %v1172 = vld [vmem:[#allocation1] sm:$0xff]
    %1173 = vst [vmem:[#allocation1] ss:$9 sm:$0xff] %v1026
    %1174 = vst [vmem:[%s1059] ss:$9 sm:$0xff] %v1027
    %1175 = vst [vmem:[%s1061] ss:$9 sm:$0xff] %v1028
    %1176 = vst [vmem:[%s1063] ss:$9 sm:$0xff] %v1029
    %1177 = vst [vmem:[%s1065] ss:$9 sm:$0xff] %v1030
    %1178 = vst [vmem:[%s1067] ss:$9 sm:$0xff] %v1031
    %1179 = vst [vmem:[%s1069] ss:$9 sm:$0xff] %v1032
    %1180 = vst [vmem:[%s1071] ss:$9 sm:$0xff] %v1033
    %v1181 = vld [vmem:[#allocation1] sm:$0xff]
    %1182 = vst [vmem:[#allocation1] ss:$9 sm:$0xff] %v1034
    %1183 = vst [vmem:[%s1059] ss:$9 sm:$0xff] %v1035
    %1184 = vst [vmem:[%s1061] ss:$9 sm:$0xff] %v1036
    %1185 = vst [vmem:[%s1063] ss:$9 sm:$0xff] %v1037
    %1186 = vst [vmem:[%s1065] ss:$9 sm:$0xff] %v1038
    %1187 = vst [vmem:[%s1067] ss:$9 sm:$0xff] %v1039
    %1188 = vst [vmem:[%s1069] ss:$9 sm:$0xff] %v1040
    %1189 = vst [vmem:[%s1071] ss:$9 sm:$0xff] %v1041
    %v1190 = vld [vmem:[#allocation1] sm:$0xff]
    %1191 = vst [vmem:[#allocation1] ss:$9 sm:$0xff] %v1042
    %1192 = vst [vmem:[%s1059] ss:$9 sm:$0xff] %v1043
    %1193 = vst [vmem:[%s1061] ss:$9 sm:$0xff] %v1044
    %1194 = vst [vmem:[%s1063] ss:$9 sm:$0xff] %v1045
    %1195 = vst [vmem:[%s1065] ss:$9 sm:$0xff] %v1046
    %1196 = vst [vmem:[%s1067] ss:$9 sm:$0xff] %v1047
    %1197 = vst [vmem:[%s1069] ss:$9 sm:$0xff] %v1048
    %1198 = vst [vmem:[%s1071] ss:$9 sm:$0xff] %v1049
    %v1199 = vld [vmem:[#allocation1] sm:$0xff]
    %1200 = vst [vmem:[#allocation1] ss:$9 sm:$0xff] %v1050
    %1201 = vst [vmem:[%s1059] ss:$9 sm:$0xff] %v1051
    %1202 = vst [vmem:[%s1061] ss:$9 sm:$0xff] %v1052
    %1203 = vst [vmem:[%s1063] ss:$9 sm:$0xff] %v1053
    %1204 = vst [vmem:[%s1065] ss:$9 sm:$0xff] %v1054
    %1205 = vst [vmem:[%s1067] ss:$9 sm:$0xff] %v1055
    %1206 = vst [vmem:[%s1069] ss:$9 sm:$0xff] %v1056
    %1207 = vst [vmem:[%s1071] ss:$9 sm:$0xff] %v1057
    %v1208 = vld [vmem:[#allocation1] sm:$0xff]
    %1209 = vset.pattern.permute.xlu0 0
    %1210 = vperm.xlu0 %1209, %v1073
    %v1211 = vpop.permute.xlu0 %1210
    %1212 = vset.pattern.permute.xlu0 0
    %1213 = vperm.xlu0 %1212, %v1082
    %v1214 = vpop.permute.xlu0 %1213
    %1215 = vset.pattern.permute.xlu0 0
    %1216 = vperm.xlu0 %1215, %v1091
    %v1217 = vpop.permute.xlu0 %1216
    %1218 = vset.pattern.permute.xlu0 0
    %1219 = vperm.xlu0 %1218, %v1100
    %v1220 = vpop.permute.xlu0 %1219
    %1221 = vset.pattern.permute.xlu0 0
    %1222 = vperm.xlu0 %1221, %v1109
    %v1223 = vpop.permute.xlu0 %1222
    %1224 = vset.pattern.permute.xlu0 0
    %1225 = vperm.xlu0 %1224, %v1118
    %v1226 = vpop.permute.xlu0 %1225
    %1227 = vset.pattern.permute.xlu0 0
    %1228 = vperm.xlu0 %1227, %v1127
    %v1229 = vpop.permute.xlu0 %1228
    %1230 = vset.pattern.permute.xlu0 0
    %1231 = vperm.xlu0 %1230, %v1136
    %v1232 = vpop.permute.xlu0 %1231
    %1233 = vset.pattern.permute.xlu0 0
    %1234 = vperm.xlu0 %1233, %v1145
    %v1235 = vpop.permute.xlu0 %1234
    %1236 = vset.pattern.permute.xlu0 0
    %1237 = vperm.xlu0 %1236, %v1154
    %v1238 = vpop.permute.xlu0 %1237
    %1239 = vset.pattern.permute.xlu0 0
    %1240 = vperm.xlu0 %1239, %v1163
    %v1241 = vpop.permute.xlu0 %1240
    %1242 = vset.pattern.permute.xlu0 0
    %1243 = vperm.xlu0 %1242, %v1172
    %v1244 = vpop.permute.xlu0 %1243
    %1245 = vset.pattern.permute.xlu0 0
    %1246 = vperm.xlu0 %1245, %v1181
    %v1247 = vpop.permute.xlu0 %1246
    %1248 = vset.pattern.permute.xlu0 0
    %1249 = vperm.xlu0 %1248, %v1190
    %v1250 = vpop.permute.xlu0 %1249
    %1251 = vset.pattern.permute.xlu0 0
    %1252 = vperm.xlu0 %1251, %v1199
    %v1253 = vpop.permute.xlu0 %1252
    %1254 = vset.pattern.permute.xlu0 0
    %1255 = vperm.xlu0 %1254, %v1208
    %v1256 = vpop.permute.xlu0 %1255
    %v1257 = vperm.slane %v1211, %v833
    %v1258 = vperm.slane %v1214, %v835
    %v1259 = vsel %vm837, %v1258, %v1257
    %v1260 = vperm.slane %v1217, %v839
    %v1261 = vsel %vm841, %v1260, %v1259
    %v1262 = vperm.slane %v1220, %v843
    %v1263 = vsel %vm845, %v1262, %v1261
    %v1264 = vperm.slane %v1223, %v847
    %v1265 = vsel %vm849, %v1264, %v1263
    %v1266 = vperm.slane %v1226, %v851
    %v1267 = vsel %vm853, %v1266, %v1265
    %v1268 = vperm.slane %v1229, %v855
    %v1269 = vsel %vm857, %v1268, %v1267
    %v1270 = vperm.slane %v1232, %v859
    %v1271 = vsel %vm861, %v1270, %v1269
    %v1272 = vperm.slane %v1235, %v863
    %v1273 = vsel %vm865, %v1272, %v1271
    %v1274 = vperm.slane %v1238, %v867
    %v1275 = vsel %vm869, %v1274, %v1273
    %v1276 = vperm.slane %v1241, %v871
    %v1277 = vsel %vm873, %v1276, %v1275
    %v1278 = vperm.slane %v1244, %v875
    %v1279 = vsel %vm877, %v1278, %v1277
    %v1280 = vperm.slane %v1247, %v879
    %v1281 = vsel %vm881, %v1280, %v1279
    %v1282 = vperm.slane %v1250, %v883
    %v1283 = vsel %vm885, %v1282, %v1281
    %v1284 = vperm.slane %v1253, %v887
    %v1285 = vsel %vm889, %v1284, %v1283
    %v1286 = vperm.slane %v1256, %v891
    %v1287 = vsel %vm893, %v1286, %v1285
    %v1289 = vmul.f32 %v897, %v1287
    %v1290 = vadd.f32 %v896, %v1289
    %s1291 = sadd.s32 0, 0
    %s1292 = smul.u32 %s1291, 128
    %v1293 = vlaneseq
    %v1294 = vshrl.u32 %v1293, 7
    %v1295 = vmul.u32 %v1294, 128
    %v1296 = vstv %s1292
    %v1297 = vadd.s32 %v1296, %v1295
    %v1298 = vadd.s32 %v1297, %v833
    %v1299 = vld [vmem:[#allocation2] sm:$0x1]
    %vm1300 = vcmp.lt.s32.totalorder %v1298, 8
    %v1301 = vsel %vm1300, %v1290, 0.0
    %v1302 = vadd.f32 %v1299, %v1301
    %1303 = vst [vmem:[#allocation2] sm:$0x1] %v1302
    // Predicated region
    $region22: #{tpu_custom_call.1} parent=1 // pred_check
      %p1304 = pneg %p130
    $region23: #{tpu_custom_call.1} parent=1 // pred_check_branch
      %1306 = sbr.rel (%p1304) target = $region25
    $region24: #{tpu_custom_call.1} parent=1 // pred_region
      %v1307 = vld [vmem:[#allocation2] sm:$0x1]
      %vm1308 = vcmask 1040384
      %v1309 = vsel %vm1308, %v1307, 0.0
      %1310 = vadd.xlane.f32.xlu0 %v1309
      %v1311 = vpop.xlane.xlu0 %1310
      %v1312 = vadd.f32 %v1311, 0.0
      %vm1313 = vcmask 0
      %1314 = vst.msk [vmem:[#allocation3] sm:$0x1] %vm1313, %v1312
    $region25: #{tpu_custom_call.1} parent=1 // pred_fallthru
      _
    // Predicated region
    $region26: #{tpu_custom_call.1} parent=1 // pred_check
      _
    $region27: #{tpu_custom_call.1} parent=1 // pred_check_branch
      %1316 = sbr.rel (0) target = $region29
    $region28: #{tpu_custom_call.1} parent=1 // pred_region
      %1318 = vsyncadd [#allocation4], 0
      %s1320 = sshll.u32 [#allocation3], 4
      %s1321 = int_to_ptr.vmem [resolvable:$true] %s1320
      %s1322 = sshll.u32 %s4, 4
      %s1323 = int_to_ptr.hbm [resolvable:$true] %s1322
      %1325 = dma.vmem_to_hbm [thread:$0]  %s1321, 16, %s1323, [#allocation4]
    $region29: #{tpu_custom_call.1} parent=1 // pred_fallthru
      _
    // Predicated region
    $region30: #{tpu_custom_call.1} parent=1 // pred_check
      _
    $region31: #{tpu_custom_call.1} parent=1 // pred_check_branch
      %1327 = sbr.rel (0) target = $region33
    $region32: #{tpu_custom_call.1} parent=1 // pred_region
      %1329 = dma.done [#allocation4], 16
    $region33: #{tpu_custom_call.1} parent=1 // pred_fallthru
      _
    %1330 = vsyncpa [#allocation4], 1

</llo_original>
